<compile_context>
chip_gen: v5e
topology: v5e:2x2
jax: 0.10.0
libtpu: 0.0.40
codegen_flags: <defaults>
</compile_context>

<pallas_src>
import functools

import jax
import jax.numpy as jnp
from jax import lax
from jax.experimental import pallas as pl
from jax.experimental.pallas import tpu as pltpu

EPS = 1e-5

# Per-pipeline-buffer, per-stream tile budget. Measured f32 streaming kernels
# are >=85% of HBM roofline well below this; bigger tiles only squeeze VMEM.
TILE_BYTES = 1 * 1024 * 1024
DEFAULT_SCOPED_VMEM = 16 * 1024 * 1024   # smallest default scoped VMEM (v5e)
MAX_VMEM_LIMIT = 56 * 1024 * 1024        # leave headroom on v7x's 64 MiB physical


def _ln_rows_kernel(*refs, eps, n_streams):
    """Per-row LayerNorm over the last axis of each (row_tile, D) stream tile."""
    g = refs[n_streams][...]          # (1, D) f32
    b = refs[n_streams + 1][...]      # (1, D) f32
    for s in range(n_streams):
        x = refs[s][...].astype(jnp.float32)
        o_ref = refs[n_streams + 2 + s]
        mu = jnp.mean(x, axis=-1, keepdims=True)
        xc = x - mu
        var = jnp.mean(xc * xc, axis=-1, keepdims=True)   # biased, matches torch
        inv = lax.rsqrt(var + eps)                        # EUP slot, hidden under DMA
        o_ref[...] = (xc * inv * g + b).astype(o_ref.dtype)
        # TODO(synk): if a v7x profile shows the lane reductions (XLU) binding
        # instead of HBM, switch to single-pass moments (sum(x), sum(x*x)) or
        # offload the row sums to the idle MXU via dot against a ones matrix.


def _tile_rows(N, D, itemsize, n_streams):
    """Pick (row_tile, num_steps): small tiles, >=2 (even) grid steps when possible."""
    sub = max(8, 32 // itemsize)                 # 8 rows f32, 16 rows bf16 (sublane packing)
    bytes_per_row = D * itemsize
    budget_rows = max(sub, (TILE_BYTES // max(bytes_per_row, 1)) // sub * sub)
    num_steps = pl.cdiv(N, budget_rows)
    if N > sub:
        num_steps = max(num_steps, 2)            # keep pipelining + both v7x TCs busy
    if num_steps > 1 and num_steps % 2:
        num_steps += 1                           # best-effort even split across 2 TCs
    row_tile = ((pl.cdiv(N, num_steps) + sub - 1) // sub) * sub
    num_steps = pl.cdiv(N, row_tile)             # re-derive so last block start < N
    return row_tile, num_steps


def _layernorm_rows(streams, gamma, beta, eps):
    """Row-wise LayerNorm of one or more (N, D) streams sharing gamma/beta/tiling."""
    n_streams = len(streams)
    N, D = streams[0].shape
    itemsize = streams[0].dtype.itemsize
    row_tile, num_steps = _tile_rows(N, D, itemsize, n_streams)

    g2 = gamma.reshape(1, D).astype(jnp.float32)
    b2 = beta.reshape(1, D).astype(jnp.float32)

    row_spec = pl.BlockSpec((row_tile, D), lambda i: (i, 0))
    par_spec = pl.BlockSpec((1, D), lambda i: (0, 0))   # same block every step -> fetched once

    # VMEM estimate: per stream, in + out double buffers (itemsize) plus ~3
    # tile-sized f32 temporaries the reduction chain materializes; plus params.
    tile_io = row_tile * D * itemsize
    tile_f32 = row_tile * D * 4
    vmem_est = n_streams * (4 * tile_io + 3 * tile_f32) + 4 * D * 4 + (1 << 20)
    cp_kwargs = dict(dimension_semantics=("parallel",))
    if vmem_est > DEFAULT_SCOPED_VMEM:
        # Only triggers for very wide D (min-row tiles already large).
        # TODO(synk): if vmem_est exceeds MAX_VMEM_LIMIT (huge D), split the
        # feature dim across a second grid axis instead of clamping.
        cp_kwargs["vmem_limit_bytes"] = int(min(vmem_est, MAX_VMEM_LIMIT))

    outs = pl.pallas_call(
        functools.partial(_ln_rows_kernel, eps=eps, n_streams=n_streams),
        out_shape=tuple(jax.ShapeDtypeStruct((N, D), s.dtype) for s in streams),
        grid_spec=pltpu.PrefetchScalarGridSpec(
            num_scalar_prefetch=0,
            grid=(num_steps,),
            in_specs=[row_spec] * n_streams + [par_spec, par_spec],
            out_specs=tuple(row_spec for _ in range(n_streams)),
        ),
        compiler_params=pltpu.CompilerParams(**cp_kwargs),
    )(*streams, g2, b2)
    return outs


def complex_layer_norm_planes(x_planes, gamma, beta, eps=EPS):
    """Zero-conversion entry point.

    x_planes: float array of shape (2, ..., D); x_planes[0] = real plane,
    x_planes[1] = imaginary plane. Returns the same shape/dtype.
    """
    shape = x_planes.shape
    D = shape[-1]
    (out,) = _layernorm_rows((x_planes.reshape(-1, D),), gamma, beta, eps)
    return out.reshape(shape)


def complex_layer_norm(x, gamma, beta, eps=EPS):
    """Drop-in equivalent of the PyTorch module: complex in, complex out."""
    shape = x.shape
    D = shape[-1]
    # real/imag extraction (one de-interleave pass) is unavoidable: JAX has no
    # complex64<->f32 bitcast. No extra stack copy — both planes go straight
    # into a single pallas_call as two row streams.
    re = jnp.real(x)
    im = jnp.imag(x)
    if re.dtype not in (jnp.float32, jnp.bfloat16):
        # TODO(synk): complex128 would need f64 math (not supported on TPU
        # vector units); falling back to f32 math here.
        re = re.astype(jnp.float32)
        im = im.astype(jnp.float32)
    o_re, o_im = _layernorm_rows((re.reshape(-1, D), im.reshape(-1, D)),
                                 gamma, beta, eps)
    return lax.complex(o_re.reshape(shape), o_im.reshape(shape))


if __name__ == "__main__":
    key = jax.random.PRNGKey(0)
    k1, k2, k3, k4 = jax.random.split(key, 4)

    # D multiple of 128 -> lane-dense loads/stores.
    # S=13 makes the row count (2*13=26 per plane) a non-multiple of the row
    # tile, exercising the masked partial-last-block path explicitly.
    B, S, D = 2, 13, 128
    x_re = jax.random.normal(k1, (B, S, D), dtype=jnp.float32)
    x_im = jax.random.normal(k2, (B, S, D), dtype=jnp.float32)
    x = lax.complex(x_re, x_im)

    # Non-trivial affine parameters (PyTorch default would be gamma=1, beta=0).
    gamma = 1.0 + 0.1 * jax.random.normal(k3, (D,), dtype=jnp.float32)
    beta = 0.1 * jax.random.normal(k4, (D,), dtype=jnp.float32)

    out = jax.block_until_ready(complex_layer_norm(x, gamma, beta))

    # Pure-JAX reference (mirrors torch.nn.LayerNorm semantics).
    def _ref_ln(v):
        mu = jnp.mean(v, axis=-1, keepdims=True)
        var = jnp.mean((v - mu) ** 2, axis=-1, keepdims=True)
        return (v - mu) * lax.rsqrt(var + EPS) * gamma + beta

    ref = lax.complex(_ref_ln(x_re), _ref_ln(x_im))
    assert jnp.allclose(jnp.real(out), jnp.real(ref), atol=1e-5, rtol=1e-5)
    assert jnp.allclose(jnp.imag(out), jnp.imag(ref), atol=1e-5, rtol=1e-5)

    # Also exercise the split-plane (zero-conversion) entry point.
    planes = jnp.stack([x_re, x_im], axis=0)
    out_p = jax.block_until_ready(complex_layer_norm_planes(planes, gamma, beta))
    assert jnp.allclose(out_p[0], jnp.real(ref), atol=1e-5, rtol=1e-5)
    assert jnp.allclose(out_p[1], jnp.imag(ref), atol=1e-5, rtol=1e-5)

    print("KERNEL_OK")
</pallas_src>

<mosaic_0001>
module attributes {stable_mosaic.version = 11 : i64} {
  func.func @_ln_rows_kernel(%arg0: i32, %arg1: memref<16x128xf32, #tpu.memory_space<vmem>>, %arg2: memref<16x128xf32, #tpu.memory_space<vmem>>, %arg3: memref<1x128xf32, #tpu.memory_space<vmem>>, %arg4: memref<1x128xf32, #tpu.memory_space<vmem>>, %arg5: memref<16x128xf32, #tpu.memory_space<vmem>>, %arg6: memref<16x128xf32, #tpu.memory_space<vmem>>) attributes {dimension_semantics = [#tpu.dimension_semantics<parallel>], iteration_bounds = array<i64: 2>, scalar_prefetch = 0 : i64, scratch_operands = 0 : i64, tpu.core_type = #tpu.core_type<tc>, window_params = [{transform_indices = @transform_0, window_bounds = array<i64: 16, 128>}, {transform_indices = @transform_1, window_bounds = array<i64: 16, 128>}, {pipeline_mode = #tpu.pipeline_mode<synchronous>, transform_indices = @transform_2, window_bounds = array<i64: 1, 128>}, {pipeline_mode = #tpu.pipeline_mode<synchronous>, transform_indices = @transform_3, window_bounds = array<i64: 1, 128>}, {transform_indices = @transform_4, window_bounds = array<i64: 16, 128>}, {transform_indices = @transform_5, window_bounds = array<i64: 16, 128>}]} {
    %c0 = arith.constant 0 : index
    %c0_0 = arith.constant 0 : index
    %0 = vector.load %arg3[%c0, %c0_0] : memref<1x128xf32, #tpu.memory_space<vmem>>, vector<1x128xf32>
    %c0_1 = arith.constant 0 : index
    %c0_2 = arith.constant 0 : index
    %1 = vector.load %arg4[%c0_1, %c0_2] : memref<1x128xf32, #tpu.memory_space<vmem>>, vector<1x128xf32>
    %c0_3 = arith.constant 0 : index
    %c0_4 = arith.constant 0 : index
    %2 = vector.load %arg1[%c0_3, %c0_4] : memref<16x128xf32, #tpu.memory_space<vmem>>, vector<16x128xf32>
    %cst = arith.constant dense<0.000000e+00> : vector<16xf32>
    %3 = vector.multi_reduction <add>, %2, %cst [1] : vector<16x128xf32> to vector<16xf32>
    %4 = vector.shape_cast %3 : vector<16xf32> to vector<16x1xf32>
    %cst_5 = arith.constant 1.280000e+02 : f32
    %5 = vector.broadcast %cst_5 : f32 to vector<16x1xf32>
    %6 = arith.divf %4, %5 : vector<16x1xf32>
    %7 = vector.broadcast %6 : vector<16x1xf32> to vector<16x128xf32>
    %8 = arith.subf %2, %7 : vector<16x128xf32>
    %9 = arith.mulf %8, %8 : vector<16x128xf32>
    %cst_6 = arith.constant dense<0.000000e+00> : vector<16xf32>
    %10 = vector.multi_reduction <add>, %9, %cst_6 [1] : vector<16x128xf32> to vector<16xf32>
    %11 = vector.shape_cast %10 : vector<16xf32> to vector<16x1xf32>
    %cst_7 = arith.constant 1.280000e+02 : f32
    %12 = vector.broadcast %cst_7 : f32 to vector<16x1xf32>
    %13 = arith.divf %11, %12 : vector<16x1xf32>
    %cst_8 = arith.constant 9.99999974E-6 : f32
    %14 = vector.broadcast %cst_8 : f32 to vector<16x1xf32>
    %15 = arith.addf %13, %14 : vector<16x1xf32>
    %16 = math.rsqrt %15 : vector<16x1xf32>
    %17 = vector.broadcast %16 : vector<16x1xf32> to vector<16x128xf32>
    %18 = arith.mulf %8, %17 : vector<16x128xf32>
    %19 = vector.broadcast %0 : vector<1x128xf32> to vector<16x128xf32>
    %20 = arith.mulf %18, %19 : vector<16x128xf32>
    %21 = vector.broadcast %1 : vector<1x128xf32> to vector<16x128xf32>
    %22 = arith.addf %20, %21 : vector<16x128xf32>
    %c0_9 = arith.constant 0 : index
    %c0_10 = arith.constant 0 : index
    %23 = vector.load %arg5[%c0_9, %c0_10] : memref<16x128xf32, #tpu.memory_space<vmem>>, vector<16x128xf32>
    tpu.vector_store %arg5[%c0_9, %c0_10], %22 {strides = array<i32>} : memref<16x128xf32, #tpu.memory_space<vmem>>, vector<16x128xf32>,
    %c0_11 = arith.constant 0 : index
    %c0_12 = arith.constant 0 : index
    %24 = vector.load %arg2[%c0_11, %c0_12] : memref<16x128xf32, #tpu.memory_space<vmem>>, vector<16x128xf32>
    %cst_13 = arith.constant dense<0.000000e+00> : vector<16xf32>
    %25 = vector.multi_reduction <add>, %24, %cst_13 [1] : vector<16x128xf32> to vector<16xf32>
    %26 = vector.shape_cast %25 : vector<16xf32> to vector<16x1xf32>
    %cst_14 = arith.constant 1.280000e+02 : f32
    %27 = vector.broadcast %cst_14 : f32 to vector<16x1xf32>
    %28 = arith.divf %26, %27 : vector<16x1xf32>
    %29 = vector.broadcast %28 : vector<16x1xf32> to vector<16x128xf32>
    %30 = arith.subf %24, %29 : vector<16x128xf32>
    %31 = arith.mulf %30, %30 : vector<16x128xf32>
    %cst_15 = arith.constant dense<0.000000e+00> : vector<16xf32>
    %32 = vector.multi_reduction <add>, %31, %cst_15 [1] : vector<16x128xf32> to vector<16xf32>
    %33 = vector.shape_cast %32 : vector<16xf32> to vector<16x1xf32>
    %cst_16 = arith.constant 1.280000e+02 : f32
    %34 = vector.broadcast %cst_16 : f32 to vector<16x1xf32>
    %35 = arith.divf %33, %34 : vector<16x1xf32>
    %cst_17 = arith.constant 9.99999974E-6 : f32
    %36 = vector.broadcast %cst_17 : f32 to vector<16x1xf32>
    %37 = arith.addf %35, %36 : vector<16x1xf32>
    %38 = math.rsqrt %37 : vector<16x1xf32>
    %39 = vector.broadcast %38 : vector<16x1xf32> to vector<16x128xf32>
    %40 = arith.mulf %30, %39 : vector<16x128xf32>
    %41 = vector.broadcast %0 : vector<1x128xf32> to vector<16x128xf32>
    %42 = arith.mulf %40, %41 : vector<16x128xf32>
    %43 = vector.broadcast %1 : vector<1x128xf32> to vector<16x128xf32>
    %44 = arith.addf %42, %43 : vector<16x128xf32>
    %c0_18 = arith.constant 0 : index
    %c0_19 = arith.constant 0 : index
    %45 = vector.load %arg6[%c0_18, %c0_19] : memref<16x128xf32, #tpu.memory_space<vmem>>, vector<16x128xf32>
    tpu.vector_store %arg6[%c0_18, %c0_19], %44 {strides = array<i32>} : memref<16x128xf32, #tpu.memory_space<vmem>>, vector<16x128xf32>,
    return
  }
  func.func @transform_0(%arg0: i32) -> (i32, i32) {
    %c0_i32 = arith.constant 0 : i32
    %c0_i32_0 = arith.constant 0 : i32
    return %arg0, %c0_i32 : i32, i32
  }
  func.func @transform_1(%arg0: i32) -> (i32, i32) {
    %c0_i32 = arith.constant 0 : i32
    %c0_i32_0 = arith.constant 0 : i32
    return %arg0, %c0_i32 : i32, i32
  }
  func.func @transform_2(%arg0: i32) -> (i32, i32) {
    %c0_i32 = arith.constant 0 : i32
    %c0_i32_0 = arith.constant 0 : i32
    %c0_i32_1 = arith.constant 0 : i32
    return %c0_i32, %c0_i32_0 : i32, i32
  }
  func.func @transform_3(%arg0: i32) -> (i32, i32) {
    %c0_i32 = arith.constant 0 : i32
    %c0_i32_0 = arith.constant 0 : i32
    %c0_i32_1 = arith.constant 0 : i32
    return %c0_i32, %c0_i32_0 : i32, i32
  }
  func.func @transform_4(%arg0: i32) -> (i32, i32) {
    %c0_i32 = arith.constant 0 : i32
    %c0_i32_0 = arith.constant 0 : i32
    return %arg0, %c0_i32 : i32, i32
  }
  func.func @transform_5(%arg0: i32) -> (i32, i32) {
    %c0_i32 = arith.constant 0 : i32
    %c0_i32_0 = arith.constant 0 : i32
    return %arg0, %c0_i32 : i32, i32
  }
}

</mosaic_0001>

<llo_original>
// kernel: tpu_custom_call.1
$region0: #{tpu_custom_call.1}
  #allocation0 [shape = 'u32[]', space=smem, size = 0x4, offset = 0x4, fixed_abs, tag = 'smem constant byte address 0x4 - core index']
  #allocation1 [shape = 'u32[72,128]{1,0:T(1,128)}', space=vmem, size = 0x9000, scoped, tag = 'internal scratch']
  %s0 = inlined_call_operand.hbm [shape: f32[26,128], index: 0, kind: input, shape index: {}]
  %s1 = inlined_call_operand.hbm [shape: f32[26,128], index: 1, kind: input, shape index: {}]
  %s2 = inlined_call_operand.vmem [shape: f32[1,128], index: 2, kind: input, shape index: {}]
  %s3 = inlined_call_operand.vmem [shape: f32[1,128], index: 3, kind: input, shape index: {}]
  %s4 = inlined_call_operand.hbm [shape: f32[26,128], index: 4, kind: output, shape index: {0}]
  %s5 = inlined_call_operand.hbm [shape: f32[26,128], index: 5, kind: output, shape index: {1}]
  %6 = xla_tuple %s4, %s5
  %s7 = sld [smem:[#allocation0]]
  $region65: #{tpu_custom_call.1} parent=0
    _
  %s9 = ssub.s32 1, %s7
  %s10 = scalar_select 0, %s9, %s7
  $region1: #{tpu_custom_call.1} parent=0
    #allocation2 [shape = 'u8[16384]{0}', space=vmem, size = 0x4000, scoped, tag = 'input window, operand 0']
    #allocation3 [shape = 's32[2]{0}', space=sflag, size = 0x8, scoped, tag = 'scoped memory for tpu_custom_call.1']
    #allocation4 [shape = 's32[2]{0}', space=sflag, size = 0x8, scoped, tag = 'scoped memory for tpu_custom_call.1']
    #allocation5 [shape = 'u8[16384]{0}', space=vmem, size = 0x4000, scoped, tag = 'input window, operand 1']
    #allocation6 [shape = 's32[2]{0}', space=sflag, size = 0x8, scoped, tag = 'scoped memory for tpu_custom_call.1']
    #allocation7 [shape = 'u8[16384]{0}', space=vmem, size = 0x4000, scoped, tag = 'output window, operand 0']
    #allocation8 [shape = 'u8[16384]{0}', space=vmem, size = 0x4000, scoped, tag = 'output window, operand 1']
    #allocation9 [shape = 's32[2]{0}', space=sflag, size = 0x8, scoped, tag = 'scoped memory for tpu_custom_call.1']
    %11 = vsyncpa [#allocation3], 0
    %s12 = scalar_lea.sflag [#allocation3], 1
    %13 = vsyncpa %s12, 0
    %14 = vsyncpa [#allocation6], 0
    %s15 = scalar_lea.sflag [#allocation6], 1
    %16 = vsyncpa %s15, 0
    %17 = vsyncpa [#allocation4], 0
    %s18 = scalar_lea.sflag [#allocation4], 1
    %19 = vsyncpa %s18, 0
    %20 = vsyncpa [#allocation9], 0
    %s21 = scalar_lea.sflag [#allocation9], 1
    %22 = vsyncpa %s21, 0
    loop: start=0, step=1, limit=4
    $region2: #{tpu_custom_call.1} parent=1 // loop_pre_header
      _
    $region3: #{tpu_custom_call.1} parent=1 // loop_header
      %s24 = sphi 0, %s28
      %p25 = scmp.ge.s32.totalorder %s24, 4
      %s34 = sphi 0, %s36
      %s37 = sphi 0, %s34
      %s38 = sphi 0, %s37
      %s54 = sphi 0, %s38
      %s60 = sphi 0, %s62
      %s63 = sphi 0, %s60
      %s64 = sphi 0, %s63
      %s80 = sphi 0, %s64
      %s84 = sphi 0, %s84
      %s86 = sphi 0, %s84
      %s87 = sphi 0, %s86
      %s101 = sphi 0, %s87
      %s105 = sphi 0, %s105
      %s107 = sphi 0, %s105
      %s108 = sphi 0, %s107
      %s122 = sphi 0, %s108
      %s128 = sphi 0, %s130
      %s131 = sphi 0, %s128
      %s132 = sphi 0, %s131
      %s148 = sphi 0, %s132
      %s154 = sphi 0, %s156
      %s157 = sphi 0, %s154
      %s158 = sphi 0, %s157
      %s174 = sphi 0, %s158
    $region4: #{tpu_custom_call.1} parent=1 // loop_header_branch
      %27 = sbr.rel (%p25) target = $region8
    $region5: #{tpu_custom_call.1} parent=1 // loop_body
      %s29 = ssub.s32 %s24, 1
      %s30 = ssub.s32 %s24, 2
      %s31 = sadd.s32 %s24, 1
      %s32 = ssub.s32 %s24, %s31
      %p33 = scmp.eq.s32.totalorder %s32, 0
      %s35 = sadd.s32 %s34, 1
      %s36 = scalar_select %p33, %s34, %s35
      %p39 = pneg %p33
      %p40 = scmp.eq.s32.totalorder %s24, 1
      %p41 = por %p39, %p40
      %p42 = scmp.ne.s32.totalorder %s34, %s37
      %p43 = scmp.eq.s32.totalorder %s24, 0
      %p44 = por %p42, %p43
      %p45 = scmp.ne.s32.totalorder %s34, %s37
      %p46 = scmp.eq.s32.totalorder %s29, 1
      %p47 = por %p45, %p46
      %p48 = scmp.ne.s32.totalorder %s37, %s38
      %p49 = scmp.eq.s32.totalorder %s29, 0
      %p50 = por %p48, %p49
      %p51 = scmp.ne.s32.totalorder %s37, %s38
      %p52 = scmp.eq.s32.totalorder %s30, 1
      %p53 = por %p51, %p52
      %p55 = scmp.ne.s32.totalorder %s38, %s54
      %p56 = scmp.eq.s32.totalorder %s30, 0
      %p57 = por %p55, %p56
      %s58 = ssub.s32 %s24, %s31
      %p59 = scmp.eq.s32.totalorder %s58, 0
      %s61 = sadd.s32 %s60, 1
      %s62 = scalar_select %p59, %s60, %s61
      %p65 = pneg %p59
      %p66 = scmp.eq.s32.totalorder %s24, 1
      %p67 = por %p65, %p66
      %p68 = scmp.ne.s32.totalorder %s60, %s63
      %p69 = scmp.eq.s32.totalorder %s24, 0
      %p70 = por %p68, %p69
      %p71 = scmp.ne.s32.totalorder %s60, %s63
      %p72 = scmp.eq.s32.totalorder %s29, 1
      %p73 = por %p71, %p72
      %p74 = scmp.ne.s32.totalorder %s63, %s64
      %p75 = scmp.eq.s32.totalorder %s29, 0
      %p76 = por %p74, %p75
      %p77 = scmp.ne.s32.totalorder %s63, %s64
      %p78 = scmp.eq.s32.totalorder %s30, 1
      %p79 = por %p77, %p78
      %p81 = scmp.ne.s32.totalorder %s64, %s80
      %p82 = scmp.eq.s32.totalorder %s30, 0
      %p83 = por %p81, %p82
      %s85 = sadd.s32 %s84, 1
      %p88 = scmp.eq.s32.totalorder %s24, 1
      %p89 = scmp.ne.s32.totalorder %s84, %s86
      %p90 = scmp.eq.s32.totalorder %s24, 0
      %p91 = por %p89, %p90
      %p92 = scmp.ne.s32.totalorder %s84, %s86
      %p93 = scmp.eq.s32.totalorder %s29, 1
      %p94 = por %p92, %p93
      %p95 = scmp.ne.s32.totalorder %s86, %s87
      %p96 = scmp.eq.s32.totalorder %s29, 0
      %p97 = por %p95, %p96
      %p98 = scmp.ne.s32.totalorder %s86, %s87
      %p99 = scmp.eq.s32.totalorder %s30, 1
      %p100 = por %p98, %p99
      %p102 = scmp.ne.s32.totalorder %s87, %s101
      %p103 = scmp.eq.s32.totalorder %s30, 0
      %p104 = por %p102, %p103
      %s106 = sadd.s32 %s105, 1
      %p109 = scmp.eq.s32.totalorder %s24, 1
      %p110 = scmp.ne.s32.totalorder %s105, %s107
      %p111 = scmp.eq.s32.totalorder %s24, 0
      %p112 = por %p110, %p111
      %p113 = scmp.ne.s32.totalorder %s105, %s107
      %p114 = scmp.eq.s32.totalorder %s29, 1
      %p115 = por %p113, %p114
      %p116 = scmp.ne.s32.totalorder %s107, %s108
      %p117 = scmp.eq.s32.totalorder %s29, 0
      %p118 = por %p116, %p117
      %p119 = scmp.ne.s32.totalorder %s107, %s108
      %p120 = scmp.eq.s32.totalorder %s30, 1
      %p121 = por %p119, %p120
      %p123 = scmp.ne.s32.totalorder %s108, %s122
      %p124 = scmp.eq.s32.totalorder %s30, 0
      %p125 = por %p123, %p124
      %s126 = ssub.s32 %s24, %s31
      %p127 = scmp.eq.s32.totalorder %s126, 0
      %s129 = sadd.s32 %s128, 1
      %s130 = scalar_select %p127, %s128, %s129
      %p133 = pneg %p127
      %p134 = scmp.eq.s32.totalorder %s24, 1
      %p135 = por %p133, %p134
      %p136 = scmp.ne.s32.totalorder %s128, %s131
      %p137 = scmp.eq.s32.totalorder %s24, 0
      %p138 = por %p136, %p137
      %p139 = scmp.ne.s32.totalorder %s128, %s131
      %p140 = scmp.eq.s32.totalorder %s29, 1
      %p141 = por %p139, %p140
      %p142 = scmp.ne.s32.totalorder %s131, %s132
      %p143 = scmp.eq.s32.totalorder %s29, 0
      %p144 = por %p142, %p143
      %p145 = scmp.ne.s32.totalorder %s131, %s132
      %p146 = scmp.eq.s32.totalorder %s30, 1
      %p147 = por %p145, %p146
      %p149 = scmp.ne.s32.totalorder %s132, %s148
      %p150 = scmp.eq.s32.totalorder %s30, 0
      %p151 = por %p149, %p150
      %s152 = ssub.s32 %s24, %s31
      %p153 = scmp.eq.s32.totalorder %s152, 0
      %s155 = sadd.s32 %s154, 1
      %s156 = scalar_select %p153, %s154, %s155
      %p159 = pneg %p153
      %p160 = scmp.eq.s32.totalorder %s24, 1
      %p161 = por %p159, %p160
      %p162 = scmp.ne.s32.totalorder %s154, %s157
      %p163 = scmp.eq.s32.totalorder %s24, 0
      %p164 = por %p162, %p163
      %p165 = scmp.ne.s32.totalorder %s154, %s157
      %p166 = scmp.eq.s32.totalorder %s29, 1
      %p167 = por %p165, %p166
      %p168 = scmp.ne.s32.totalorder %s157, %s158
      %p169 = scmp.eq.s32.totalorder %s29, 0
      %p170 = por %p168, %p169
      %p171 = scmp.ne.s32.totalorder %s157, %s158
      %p172 = scmp.eq.s32.totalorder %s30, 1
      %p173 = por %p171, %p172
      %p175 = scmp.ne.s32.totalorder %s158, %s174
      %p176 = scmp.eq.s32.totalorder %s30, 0
      %p177 = por %p175, %p176
      %p178 = scmp.le.s32.totalorder 1, %s24
      %p179 = scmp.lt.s32.totalorder %s24, 3
      %p180 = pnand %p178, %p179
      %p181 = pneg %p180
      // Predicated region
      $region9: #{tpu_custom_call.1} parent=5 // pred_check
        _
      $region10: #{tpu_custom_call.1} parent=5 // pred_check_branch
        %183 = sbr.rel (%p180) target = $region12
      $region11: #{tpu_custom_call.1} parent=5 // pred_region
        %s184 = ssub.s32 %s24, 1
        // Predicated region
        $region13: #{tpu_custom_call.1} parent=11 // pred_check
          %p185 = pneg %p97
        $region14: #{tpu_custom_call.1} parent=11 // pred_check_branch
          %187 = sbr.rel (%p185) target = $region16
        $region15: #{tpu_custom_call.1} parent=11 // pred_region
          _
        $region16: #{tpu_custom_call.1} parent=11 // pred_fallthru
          _
        // Predicated region
        $region17: #{tpu_custom_call.1} parent=11 // pred_check
          %p188 = pneg %p118
        $region18: #{tpu_custom_call.1} parent=11 // pred_check_branch
          %190 = sbr.rel (%p188) target = $region20
        $region19: #{tpu_custom_call.1} parent=11 // pred_region
          _
        $region20: #{tpu_custom_call.1} parent=11 // pred_fallthru
          _
      $region12: #{tpu_custom_call.1} parent=5 // pred_fallthru
        _
      %p191 = scmp.lt.s32.totalorder %s24, 2
      // Predicated region
      $region21: #{tpu_custom_call.1} parent=5 // pred_check
        %p192 = pneg %p191
      $region22: #{tpu_custom_call.1} parent=5 // pred_check_branch
        %194 = sbr.rel (%p192) target = $region24
      $region23: #{tpu_custom_call.1} parent=5 // pred_region
        // Predicated region
        $region25: #{tpu_custom_call.1} parent=23 // pred_check
          %p195 = pneg %p44
        $region26: #{tpu_custom_call.1} parent=23 // pred_check_branch
          %197 = sbr.rel (%p195) target = $region28
        $region27: #{tpu_custom_call.1} parent=23 // pred_region
          %s198 = sand.u32 %s34, 1
          %s199 = scalar_lea.sflag [#allocation3], %s198
          %s200 = sand.u32 %s34, 1
          %s201 = smul.addr %s200, 16
          %s202 = scalar_lea.vmem [#allocation2], %s201
          %s203 = smul.u32 2, %s24
          %205 = vsyncadd %s199, 0
          %s206 = smul.addr %s203, 8
          %s207 = scalar_lea.hbm %s0, %s206
          %s208 = sshll.u32 %s207, 4
          %s209 = int_to_ptr.hbm [resolvable:$true] %s208
          %s210 = sshll.u32 %s202, 4
          %s211 = int_to_ptr.vmem [resolvable:$true] %s210
          %216 = dma.hbm_to_vmem [thread:$0]  %s209, 256, %s211, %s199, 128, 128, 8
        $region28: #{tpu_custom_call.1} parent=23 // pred_fallthru
          _
        // Predicated region
        $region29: #{tpu_custom_call.1} parent=23 // pred_check
          %p217 = pneg %p70
        $region30: #{tpu_custom_call.1} parent=23 // pred_check_branch
          %219 = sbr.rel (%p217) target = $region32
        $region31: #{tpu_custom_call.1} parent=23 // pred_region
          %s220 = sand.u32 %s60, 1
          %s221 = scalar_lea.sflag [#allocation6], %s220
          %s222 = sand.u32 %s60, 1
          %s223 = smul.addr %s222, 16
          %s224 = scalar_lea.vmem [#allocation5], %s223
          %s225 = smul.u32 2, %s24
          %227 = vsyncadd %s221, 0
          %s228 = smul.addr %s225, 8
          %s229 = scalar_lea.hbm %s1, %s228
          %s230 = sshll.u32 %s229, 4
          %s231 = int_to_ptr.hbm [resolvable:$true] %s230
          %s232 = sshll.u32 %s224, 4
          %s233 = int_to_ptr.vmem [resolvable:$true] %s232
          %238 = dma.hbm_to_vmem [thread:$0]  %s231, 256, %s233, %s221, 128, 128, 8
        $region32: #{tpu_custom_call.1} parent=23 // pred_fallthru
          _
      $region24: #{tpu_custom_call.1} parent=5 // pred_fallthru
        _
      %p239 = scmp.le.s32.totalorder 1, %s24
      %p240 = scmp.lt.s32.totalorder %s24, 3
      %p241 = pnand %p239, %p240
      %p242 = pneg %p241
      // Predicated region
      $region33: #{tpu_custom_call.1} parent=5 // pred_check
        _
      $region34: #{tpu_custom_call.1} parent=5 // pred_check_branch
        %244 = sbr.rel (%p241) target = $region36
      $region35: #{tpu_custom_call.1} parent=5 // pred_region
        %s245 = ssub.s32 %s24, 1
        %s246 = sand.u32 %s37, 1
        %s247 = scalar_lea.sflag [#allocation3], %s246
        %s248 = sand.u32 %s37, 1
        %s249 = smul.addr %s248, 16
        %s250 = scalar_lea.vmem [#allocation2], %s249
        // Predicated region
        $region37: #{tpu_custom_call.1} parent=35 // pred_check
          %p251 = pneg %p50
        $region38: #{tpu_custom_call.1} parent=35 // pred_check_branch
          %253 = sbr.rel (%p251) target = $region40
        $region39: #{tpu_custom_call.1} parent=35 // pred_region
          %255 = dma.done %s247, 256
        $region40: #{tpu_custom_call.1} parent=35 // pred_fallthru
          _
        %s256 = sand.u32 %s63, 1
        %s257 = scalar_lea.sflag [#allocation6], %s256
        %s258 = sand.u32 %s63, 1
        %s259 = smul.addr %s258, 16
        %s260 = scalar_lea.vmem [#allocation5], %s259
        // Predicated region
        $region41: #{tpu_custom_call.1} parent=35 // pred_check
          %p261 = pneg %p76
        $region42: #{tpu_custom_call.1} parent=35 // pred_check_branch
          %263 = sbr.rel (%p261) target = $region44
        $region43: #{tpu_custom_call.1} parent=35 // pred_region
          %265 = dma.done %s257, 256
        $region44: #{tpu_custom_call.1} parent=35 // pred_fallthru
          _
        %s266 = sand.u32 %s37, 1
        %s267 = scalar_lea.sflag [#allocation3], %s266
        %s268 = sand.u32 %s37, 1
        %s269 = smul.addr %s268, 16
        %s270 = scalar_lea.vmem [#allocation2], %s269
        %p271 = pneg %p50
        %p272 = pneg %p47
        %s273 = sand.u32 %s63, 1
        %s274 = scalar_lea.sflag [#allocation6], %s273
        %s275 = sand.u32 %s63, 1
        %s276 = smul.addr %s275, 16
        %s277 = scalar_lea.vmem [#allocation5], %s276
        %p278 = pneg %p76
        %p279 = pneg %p73
        %p280 = pneg %p97
        %p281 = pneg %p94
        %p282 = pneg %p118
        %p283 = pneg %p115
        %p284 = pneg %p144
        %p285 = pneg %p141
        %s286 = sand.u32 %s131, 1
        %s287 = scalar_lea.sflag [#allocation4], %s286
        %s288 = sand.u32 %s131, 1
        %s289 = smul.addr %s288, 16
        %s290 = scalar_lea.vmem [#allocation7], %s289
        %p291 = pneg %p170
        %p292 = pneg %p167
        %s293 = sand.u32 %s157, 1
        %s294 = scalar_lea.sflag [#allocation9], %s293
        %s295 = sand.u32 %s157, 1
        %s296 = smul.addr %s295, 16
        %s297 = scalar_lea.vmem [#allocation8], %s296
        %s298 = smul.u32 2, %s29
        %s299 = smul.u32 2, %s29
        %s300 = smul.u32 2, %s29
        %s301 = smul.u32 2, %s29
        %v302 = vld [vmem:[%s2] sm:$0x1]
        %v303 = vld [vmem:[%s3] sm:$0x1]
        %v304 = vld [vmem:[%s250] sm:$0xff]
        %v305 = vld [vmem:[%s250 + $0x8] sm:$0xff]
        %306 = vadd.xlane.f32.xlu0 %v304
        %v307 = vpop.xlane.xlu0 %306
        %308 = vadd.xlane.f32.xlu0 %v305
        %v309 = vpop.xlane.xlu0 %308
        %v310 = vrcp.pop 128.0
        %v311 = vmul.f32 128.0, %v310
        %v312 = vsub.f32 1.0, %v311
        %v313 = vmul.f32 %v310, %v312
        %v314 = vadd.f32 %v310, %v313
        %vm315 = vweird.f32 %v310
        %v316 = vsel %vm315, %v310, %v314
        %v317 = vmul.f32 %v307, %v316
        %v318 = vmul.f32 %v309, %v316
        %v319 = vsub.f32 %v304, %v317
        %v320 = vsub.f32 %v305, %v318
        %v321 = vmul.f32 %v319, %v319
        %v322 = vmul.f32 %v320, %v320
        %323 = vadd.xlane.f32.xlu0 %v321
        %v324 = vpop.xlane.xlu0 %323
        %325 = vadd.xlane.f32.xlu0 %v322
        %v326 = vpop.xlane.xlu0 %325
        %v327 = vmul.f32 %v324, %v316
        %v328 = vmul.f32 %v326, %v316
        %v329 = vadd.f32 %v327, 1e-05
        %v330 = vadd.f32 %v328, 1e-05
        %v331 = vrsqrt.pop %v329
        %v332 = vmul.f32 %v331, %v329
        %v333 = vmul.f32 %v332, %v331
        %v334 = vmul.f32 0.5, %v333
        %v335 = vsub.f32 1.5, %v334
        %v336 = vmul.f32 %v331, %v335
        %vm337 = vweird.f32 %v329
        %vm338 = vweird.f32 %v331
        %vm339 = vmor %vm337, %vm338
        %v340 = vsel %vm339, %v331, %v336
        %v341 = vrsqrt.pop %v330
        %v342 = vmul.f32 %v341, %v330
        %v343 = vmul.f32 %v342, %v341
        %v344 = vmul.f32 0.5, %v343
        %v345 = vsub.f32 1.5, %v344
        %v346 = vmul.f32 %v341, %v345
        %vm347 = vweird.f32 %v330
        %vm348 = vweird.f32 %v341
        %vm349 = vmor %vm347, %vm348
        %v350 = vsel %vm349, %v341, %v346
        %v351 = vmul.f32 %v319, %v340
        %v352 = vmul.f32 %v320, %v350
        %v354 = vperm.slane %v302, 0
        %v356 = vmul.f32 %v351, %v354
        %v357 = vmul.f32 %v352, %v354
        %v359 = vperm.slane %v303, 0
        %v361 = vadd.f32 %v356, %v359
        %v362 = vadd.f32 %v357, %v359
        %363 = vst [vmem:[%s290] sm:$0xff] %v361
        %364 = vst [vmem:[%s290 + $0x8] sm:$0xff] %v362
        %v365 = vld [vmem:[%s260] sm:$0xff]
        %v366 = vld [vmem:[%s260 + $0x8] sm:$0xff]
        %367 = vadd.xlane.f32.xlu0 %v365
        %v368 = vpop.xlane.xlu0 %367
        %369 = vadd.xlane.f32.xlu0 %v366
        %v370 = vpop.xlane.xlu0 %369
        %v371 = vmul.f32 %v368, %v316
        %v372 = vmul.f32 %v370, %v316
        %v373 = vsub.f32 %v365, %v371
        %v374 = vsub.f32 %v366, %v372
        %v375 = vmul.f32 %v373, %v373
        %v376 = vmul.f32 %v374, %v374
        %377 = vadd.xlane.f32.xlu0 %v375
        %v378 = vpop.xlane.xlu0 %377
        %379 = vadd.xlane.f32.xlu0 %v376
        %v380 = vpop.xlane.xlu0 %379
        %v381 = vmul.f32 %v378, %v316
        %v382 = vmul.f32 %v380, %v316
        %v383 = vadd.f32 %v381, 1e-05
        %v384 = vadd.f32 %v382, 1e-05
        %v385 = vrsqrt.pop %v383
        %v386 = vmul.f32 %v385, %v383
        %v387 = vmul.f32 %v386, %v385
        %v388 = vmul.f32 0.5, %v387
        %v389 = vsub.f32 1.5, %v388
        %v390 = vmul.f32 %v385, %v389
        %vm391 = vweird.f32 %v383
        %vm392 = vweird.f32 %v385
        %vm393 = vmor %vm391, %vm392
        %v394 = vsel %vm393, %v385, %v390
        %v395 = vrsqrt.pop %v384
        %v396 = vmul.f32 %v395, %v384
        %v397 = vmul.f32 %v396, %v395
        %v398 = vmul.f32 0.5, %v397
        %v399 = vsub.f32 1.5, %v398
        %v400 = vmul.f32 %v395, %v399
        %vm401 = vweird.f32 %v384
        %vm402 = vweird.f32 %v395
        %vm403 = vmor %vm401, %vm402
        %v404 = vsel %vm403, %v395, %v400
        %v405 = vmul.f32 %v373, %v394
        %v406 = vmul.f32 %v374, %v404
        %v407 = vmul.f32 %v405, %v354
        %v408 = vmul.f32 %v406, %v354
        %v409 = vadd.f32 %v407, %v359
        %v410 = vadd.f32 %v408, %v359
        %411 = vst [vmem:[%s297] sm:$0xff] %v409
        %412 = vst [vmem:[%s297 + $0x8] sm:$0xff] %v410
        %s413 = sand.u32 %s131, 1
        %s414 = scalar_lea.sflag [#allocation4], %s413
        %s415 = sand.u32 %s131, 1
        %s416 = smul.addr %s415, 16
        %s417 = scalar_lea.vmem [#allocation7], %s416
        %s418 = sand.u32 %s157, 1
        %s419 = scalar_lea.sflag [#allocation9], %s418
        %s420 = sand.u32 %s157, 1
        %s421 = smul.addr %s420, 16
        %s422 = scalar_lea.vmem [#allocation8], %s421
        // Predicated region
        $region45: #{tpu_custom_call.1} parent=35 // pred_check
          %p423 = pneg %p141
        $region46: #{tpu_custom_call.1} parent=35 // pred_check_branch
          %425 = sbr.rel (%p423) target = $region48
        $region47: #{tpu_custom_call.1} parent=35 // pred_region
          %s426 = smul.u32 2, %s29
          %428 = vsyncadd %s414, 0
          %s429 = smul.addr %s426, 8
          %s430 = scalar_lea.hbm %s4, %s429
          %s431 = sshll.u32 %s417, 4
          %s432 = int_to_ptr.vmem [resolvable:$true] %s431
          %s433 = sshll.u32 %s430, 4
          %s434 = int_to_ptr.hbm [resolvable:$true] %s433
          %439 = dma.vmem_to_hbm [thread:$0]  %s432, 256, %s434, %s414, 128, 128, 8
        $region48: #{tpu_custom_call.1} parent=35 // pred_fallthru
          _
        // Predicated region
        $region49: #{tpu_custom_call.1} parent=35 // pred_check
          %p440 = pneg %p167
        $region50: #{tpu_custom_call.1} parent=35 // pred_check_branch
          %442 = sbr.rel (%p440) target = $region52
        $region51: #{tpu_custom_call.1} parent=35 // pred_region
          %s443 = smul.u32 2, %s29
          %445 = vsyncadd %s419, 0
          %s446 = smul.addr %s443, 8
          %s447 = scalar_lea.hbm %s5, %s446
          %s448 = sshll.u32 %s422, 4
          %s449 = int_to_ptr.vmem [resolvable:$true] %s448
          %s450 = sshll.u32 %s447, 4
          %s451 = int_to_ptr.hbm [resolvable:$true] %s450
          %456 = dma.vmem_to_hbm [thread:$0]  %s449, 256, %s451, %s419, 128, 128, 8
        $region52: #{tpu_custom_call.1} parent=35 // pred_fallthru
          _
      $region36: #{tpu_custom_call.1} parent=5 // pred_fallthru
        _
      %p457 = scmp.le.s32.totalorder 2, %s24
      // Predicated region
      $region53: #{tpu_custom_call.1} parent=5 // pred_check
        %p458 = pneg %p457
      $region54: #{tpu_custom_call.1} parent=5 // pred_check_branch
        %460 = sbr.rel (%p458) target = $region56
      $region55: #{tpu_custom_call.1} parent=5 // pred_region
        %s461 = ssub.s32 %s24, 2
        // Predicated region
        $region57: #{tpu_custom_call.1} parent=55 // pred_check
          %p462 = pneg %p147
        $region58: #{tpu_custom_call.1} parent=55 // pred_check_branch
          %464 = sbr.rel (%p462) target = $region60
        $region59: #{tpu_custom_call.1} parent=55 // pred_region
          %s465 = sand.u32 %s132, 1
          %s466 = scalar_lea.sflag [#allocation4], %s465
          %s467 = sand.u32 %s132, 1
          %s468 = smul.addr %s467, 16
          %s469 = scalar_lea.vmem [#allocation7], %s468
          %471 = dma.done %s466, 256
        $region60: #{tpu_custom_call.1} parent=55 // pred_fallthru
          _
        // Predicated region
        $region61: #{tpu_custom_call.1} parent=55 // pred_check
          %p472 = pneg %p173
        $region62: #{tpu_custom_call.1} parent=55 // pred_check_branch
          %474 = sbr.rel (%p472) target = $region64
        $region63: #{tpu_custom_call.1} parent=55 // pred_region
          %s475 = sand.u32 %s158, 1
          %s476 = scalar_lea.sflag [#allocation9], %s475
          %s477 = sand.u32 %s158, 1
          %s478 = smul.addr %s477, 16
          %s479 = scalar_lea.vmem [#allocation8], %s478
          %481 = dma.done %s476, 256
        $region64: #{tpu_custom_call.1} parent=55 // pred_fallthru
          _
      $region56: #{tpu_custom_call.1} parent=5 // pred_fallthru
        _
    $region6: #{tpu_custom_call.1} parent=1 // loop_footer
      %s28 = sadd.s32 1, %s24
    $region7: #{tpu_custom_call.1} parent=1 // loop_footer_branch
      %23 = sbr.rel target = $region3
    $region8: #{tpu_custom_call.1} parent=1 // loop_exit
      _
    %482 = vsyncpa [#allocation3], 1
    %s483 = scalar_lea.sflag [#allocation3], 1
    %484 = vsyncpa %s483, 1
    %485 = vsyncpa [#allocation6], 1
    %s486 = scalar_lea.sflag [#allocation6], 1
    %487 = vsyncpa %s486, 1
    %488 = vsyncpa [#allocation4], 1
    %s489 = scalar_lea.sflag [#allocation4], 1
    %490 = vsyncpa %s489, 1
    %491 = vsyncpa [#allocation9], 1
    %s492 = scalar_lea.sflag [#allocation9], 1
    %493 = vsyncpa %s492, 1

</llo_original>
